<compile_context>
chip_gen: v6e
topology: v6e:2x2x1
jax: 0.10.0
libtpu: 0.0.40
codegen_flags: <defaults>
</compile_context>

<pallas_src>
import functools

import jax
import jax.numpy as jnp
from jax import lax
from jax.experimental import pallas as pl
from jax.experimental.pallas import tpu as pltpu

_MIB = 1024 * 1024


def _sce_kernel(logits_ref, labels_ref, out_ref,
                m_ref, l_ref, xsum_ref, xlab_ref, *,
                alpha, num_classes, batch, block_rows, block_cols, mask_cols):
    i = pl.program_id(0)                 # batch-tile index  ("parallel")
    k = pl.program_id(1)                 # class-tile index  ("arbitrary", innermost)
    nk = pl.num_programs(1)

    @pl.when(k == 0)
    def _init():
        m_ref[...] = jnp.full_like(m_ref, -jnp.inf)
        l_ref[...] = jnp.zeros_like(l_ref)
        xsum_ref[...] = jnp.zeros_like(xsum_ref)
        xlab_ref[...] = jnp.zeros_like(xlab_ref)

    x_raw = logits_ref[...]                              # [TB, TC] wire dtype
    labels = labels_ref[...]                             # [TB, 1]  int32
    x = x_raw.astype(jnp.float32)                        # upcast in-register

    col_ids = lax.broadcasted_iota(jnp.int32, x_raw.shape, 1)

    if mask_cols:
        # Only compiled in when TC does not divide C: hide the padded columns
        # of the last class tile from max / exp / sum.
        valid = (k * block_cols + col_ids) < num_classes
        x_m = jnp.where(valid, x, -jnp.inf)              # feeds max / exp
        x_s = jnp.where(valid, x, 0.0)                   # feeds the plain sum
        m_blk = jnp.max(x_m, axis=-1, keepdims=True)
    else:
        x_m = x
        x_s = x
        # Block max on the wire dtype (packed bf16 VALU on v6e/v7x).
        m_blk = jnp.max(x_raw, axis=-1, keepdims=True).astype(jnp.float32)

    # ---- online log-sum-exp update (running stats stay in f32 scratch) ----
    m_old = m_ref[...]
    m_new = jnp.maximum(m_old, m_blk)
    corr = jnp.exp(m_old - m_new)                        # per-row, cheap (EUP)
    l_ref[...] = l_ref[...] * corr + jnp.sum(
        jnp.exp(x_m - m_new), axis=-1, keepdims=True)
    m_ref[...] = m_new

    # ---- shift-free accumulators taken straight from x (one pass) ----
    # The label's column is always a valid class, so no column mask is needed.
    hit = col_ids == (labels - k * block_cols)
    xlab_ref[...] += jnp.sum(jnp.where(hit, x, 0.0), axis=-1, keepdims=True)
    if alpha != 0.0:
        xsum_ref[...] += jnp.sum(x_s, axis=-1, keepdims=True)

    @pl.when(k == nk - 1)
    def _finalize():
        lse = m_ref[...] + jnp.log(l_ref[...])           # full-row LSE
        if alpha != 0.0:
            w = ((1.0 - alpha) * xlab_ref[...]
                 + (alpha / num_classes) * xsum_ref[...])
        else:
            w = xlab_ref[...]
        per_row = lse - w
        row_ids = i * block_rows + lax.broadcasted_iota(
            jnp.int32, per_row.shape, 0)
        out_ref[...] = jnp.where(row_ids < batch, per_row, 0.0)


def _choose_tiles(batch, num_classes, itemsize):
    """Generation-aware (TB, TC, vmem_limit_bytes) selection."""
    try:
        vmem_cap = int(pltpu.get_tpu_info().vmem_capacity_bytes)
    except Exception:  # pragma: no cover - conservative fallback
        vmem_cap = 128 * _MIB

    if vmem_cap <= 64 * _MIB:
        # v7x-class part: 64 MiB physical VMEM, 2 TensorCores per chip.
        vmem_limit = 48 * _MIB
        logits_budget = 32 * _MIB        # double-buffered logits tiles
        two_cores = True
    else:
        # v5e / v6e: 128 MiB physical VMEM, single TensorCore.
        vmem_limit = 80 * _MIB
        logits_budget = 48 * _MIB
        two_cores = False

    b_pad = pl.cdiv(batch, 8) * 8
    max_tb = 1024

    # Class tile: a single block whenever a (max_tb x C) tile fits the budget,
    # otherwise a fixed lane-dense tile; prefer a divisor of C so the tail
    # block needs no column masking.
    if 2 * max_tb * num_classes * itemsize <= logits_budget:
        tc = num_classes
    else:
        tc = 2048
        for cand in (4096, 2048, 1024, 512, 256, 128):
            if num_classes % cand == 0:
                tc = cand
                break

    # Row tile: largest multiple of 8 keeping the double-buffered logits tile
    # inside the budget (target 512-1024 rows).
    tb = logits_budget // max(1, 2 * tc * itemsize)
    tb = min(max_tb, max(8, tb - tb % 8))
    tb = min(tb, b_pad)

    if two_cores and b_pad >= 16:
        # Guarantee >= 2 batch blocks so "parallel" actually uses both cores.
        half = max(8, (b_pad // 2) // 8 * 8)
        tb = min(tb, half)

    return tb, tc, vmem_limit


def smooth_cross_entropy(logits, labels, alpha=0.1, *,
                         block_rows=None, block_cols=None):
    """Pallas equivalent of SmoothCrossEntropy.forward (mean-reduced loss)."""
    B, C = logits.shape
    labels2d = labels.astype(jnp.int32).reshape(B, 1)
    itemsize = jnp.dtype(logits.dtype).itemsize

    tb, tc, vmem_limit = _choose_tiles(B, C, itemsize)
    if block_rows is not None:
        tb = block_rows
    if block_cols is not None:
        tc = block_cols

    grid_b = pl.cdiv(B, tb)
    grid_c = pl.cdiv(C, tc)
    b_pad = grid_b * tb
    mask_cols = (C % tc) != 0

    kernel = functools.partial(
        _sce_kernel, alpha=float(alpha), num_classes=C, batch=B,
        block_rows=tb, block_cols=tc, mask_cols=mask_cols)

    cost = pl.CostEstimate(
        flops=8 * B * C,
        transcendentals=B * C,
        bytes_accessed=B * C * itemsize + B * 4 + b_pad * 4,
    )

    per_row = pl.pallas_call(
        kernel,
        out_shape=jax.ShapeDtypeStruct((b_pad, 1), jnp.float32),
        grid=(grid_b, grid_c),
        in_specs=[
            # The single large, lane-dense DMA stream.
            # (pipeline_mode=pl.Buffered(3) only if profiling shows exposed DMA.)
            pl.BlockSpec((tb, tc), lambda i, k: (i, k)),
            # Block index constant along k -> this narrow tile is DMA'd once
            # per batch block, not once per grid step.
            pl.BlockSpec((tb, 1), lambda i, k: (i, 0)),
        ],
        # Resident across the class axis; written once per batch block.
        out_specs=pl.BlockSpec((tb, 1), lambda i, k: (i, 0)),
        scratch_shapes=[pltpu.VMEM((tb, 1), jnp.float32)] * 4,
        compiler_params=pltpu.CompilerParams(
            dimension_semantics=("parallel", "arbitrary"),
            vmem_limit_bytes=int(vmem_limit),
        ),
        cost_estimate=cost,
    )(logits, labels2d)

    # Tiny final reduction; padded rows are already zeroed in-kernel.
    return jnp.sum(per_row) / jnp.float32(B)


def _reference(logits, labels, alpha):
    logp = jax.nn.log_softmax(logits.astype(jnp.float32), axis=-1)
    if alpha == 0.0:
        return jnp.mean(-jnp.take_along_axis(logp, labels[:, None], axis=-1))
    C = logits.shape[-1]
    tp = jax.nn.one_hot(labels, C, dtype=jnp.float32) * (1.0 - alpha) + alpha / C
    return jnp.mean(-jnp.sum(tp * logp, axis=-1))


if __name__ == "__main__":
    key = jax.random.PRNGKey(0)
    k1, k2, k3, k4 = jax.random.split(key, 4)

    # Case 1/2: small single-class-block path (auto tiling), alpha=0.1 and 0.
    B, C = 8, 32
    logits = jax.random.normal(k1, (B, C), dtype=jnp.float32)
    labels = jax.random.randint(k2, (B,), 0, C, dtype=jnp.int32)

    loss = smooth_cross_entropy(logits, labels, alpha=0.1)
    jax.block_until_ready(loss)
    assert jnp.allclose(loss, _reference(logits, labels, 0.1),
                        atol=1e-5, rtol=1e-5), loss

    loss0 = smooth_cross_entropy(logits, labels, alpha=0.0)
    jax.block_until_ready(loss0)
    assert jnp.allclose(loss0, _reference(logits, labels, 0.0),
                        atol=1e-5, rtol=1e-5), loss0

    # Case 3: forced small tiles to exercise the online-LSE class tiling,
    # column tail masking (C % tc != 0) and row tail masking (B % tb != 0).
    B2, C2 = 12, 200
    logits2 = jax.random.normal(k3, (B2, C2), dtype=jnp.float32) * 3.0
    labels2 = jax.random.randint(k4, (B2,), 0, C2, dtype=jnp.int32)
    loss2 = smooth_cross_entropy(logits2, labels2, alpha=0.1,
                                 block_rows=8, block_cols=128)
    jax.block_until_ready(loss2)
    assert jnp.allclose(loss2, _reference(logits2, labels2, 0.1),
                        atol=1e-5, rtol=1e-5), loss2

    print("KERNEL_OK")
</pallas_src>

<mosaic_0001>
module attributes {stable_mosaic.version = 11 : i64} {
  func.func @_sce_kernel(%arg0: i32, %arg1: i32, %arg2: memref<8x32xf32, #tpu.memory_space<vmem>>, %arg3: memref<8x1xi32, #tpu.memory_space<vmem>>, %arg4: memref<8x1xf32, #tpu.memory_space<vmem>>, %arg5: memref<8x1xf32, #tpu.memory_space<vmem>>, %arg6: memref<8x1xf32, #tpu.memory_space<vmem>>, %arg7: memref<8x1xf32, #tpu.memory_space<vmem>>, %arg8: memref<8x1xf32, #tpu.memory_space<vmem>>) attributes {dimension_semantics = [#tpu.dimension_semantics<parallel>, #tpu.dimension_semantics<arbitrary>], iteration_bounds = array<i64: 1, 1>, scalar_prefetch = 0 : i64, scratch_operands = 4 : i64, tpu.core_type = #tpu.core_type<tc>, window_params = [{transform_indices = @transform_0, window_bounds = array<i64: 8, 32>}, {transform_indices = @transform_1, window_bounds = array<i64: 8, 1>}, {transform_indices = @transform_2, window_bounds = array<i64: 8, 1>}]} {
    %c0_i32 = arith.constant 0 : i32
    %0 = arith.cmpi eq, %arg1, %c0_i32 : i32
    %1 = arith.extui %0 : i1 to i32
    %c0_i32_0 = arith.constant 0 : i32
    %2 = arith.cmpi ne, %1, %c0_i32_0 : i32
    scf.if %2 {
      %cst_26 = arith.constant 0xFF800000 : f32
      %42 = vector.broadcast %cst_26 : f32 to vector<8x1xf32>
      %c0_27 = arith.constant 0 : index
      %c0_28 = arith.constant 0 : index
      %43 = vector.load %arg5[%c0_27, %c0_28] : memref<8x1xf32, #tpu.memory_space<vmem>>, vector<8x1xf32>
      tpu.vector_store %arg5[%c0_27, %c0_28], %42 {strides = array<i32>} : memref<8x1xf32, #tpu.memory_space<vmem>>, vector<8x1xf32>,
      %cst_29 = arith.constant 0.000000e+00 : f32
      %44 = vector.broadcast %cst_29 : f32 to vector<8x1xf32>
      %c0_30 = arith.constant 0 : index
      %c0_31 = arith.constant 0 : index
      %45 = vector.load %arg6[%c0_30, %c0_31] : memref<8x1xf32, #tpu.memory_space<vmem>>, vector<8x1xf32>
      tpu.vector_store %arg6[%c0_30, %c0_31], %44 {strides = array<i32>} : memref<8x1xf32, #tpu.memory_space<vmem>>, vector<8x1xf32>,
      %cst_32 = arith.constant 0.000000e+00 : f32
      %46 = vector.broadcast %cst_32 : f32 to vector<8x1xf32>
      %c0_33 = arith.constant 0 : index
      %c0_34 = arith.constant 0 : index
      %47 = vector.load %arg7[%c0_33, %c0_34] : memref<8x1xf32, #tpu.memory_space<vmem>>, vector<8x1xf32>
      tpu.vector_store %arg7[%c0_33, %c0_34], %46 {strides = array<i32>} : memref<8x1xf32, #tpu.memory_space<vmem>>, vector<8x1xf32>,
      %cst_35 = arith.constant 0.000000e+00 : f32
      %48 = vector.broadcast %cst_35 : f32 to vector<8x1xf32>
      %c0_36 = arith.constant 0 : index
      %c0_37 = arith.constant 0 : index
      %49 = vector.load %arg8[%c0_36, %c0_37] : memref<8x1xf32, #tpu.memory_space<vmem>>, vector<8x1xf32>
      tpu.vector_store %arg8[%c0_36, %c0_37], %48 {strides = array<i32>} : memref<8x1xf32, #tpu.memory_space<vmem>>, vector<8x1xf32>,
    } else {
    }
    %c0 = arith.constant 0 : index
    %c0_1 = arith.constant 0 : index
    %3 = vector.load %arg2[%c0, %c0_1] : memref<8x32xf32, #tpu.memory_space<vmem>>, vector<8x32xf32>
    %c0_2 = arith.constant 0 : index
    %c0_3 = arith.constant 0 : index
    %4 = vector.load %arg3[%c0_2, %c0_3] : memref<8x1xi32, #tpu.memory_space<vmem>>, vector<8x1xi32>
    %5 = tpu.iota {dimensions = array<i32: 1>} : vector<8x32xi32>
    %cst = arith.constant dense<0xFF800000> : vector<8xf32>
    %6 = vector.multi_reduction <maximumf>, %3, %cst [1] : vector<8x32xf32> to vector<8xf32>
    %7 = vector.shape_cast %6 : vector<8xf32> to vector<8x1xf32>
    %c0_4 = arith.constant 0 : index
    %c0_5 = arith.constant 0 : index
    %8 = vector.load %arg5[%c0_4, %c0_5] : memref<8x1xf32, #tpu.memory_space<vmem>>, vector<8x1xf32>
    %9 = arith.maximumf %8, %7 : vector<8x1xf32>
    %10 = arith.subf %8, %9 : vector<8x1xf32>
    %11 = math.exp %10 : vector<8x1xf32>
    %c0_6 = arith.constant 0 : index
    %c0_7 = arith.constant 0 : index
    %12 = vector.load %arg6[%c0_6, %c0_7] : memref<8x1xf32, #tpu.memory_space<vmem>>, vector<8x1xf32>
    %13 = arith.mulf %12, %11 : vector<8x1xf32>
    %14 = vector.broadcast %9 : vector<8x1xf32> to vector<8x32xf32>
    %15 = arith.subf %3, %14 : vector<8x32xf32>
    %16 = math.exp %15 : vector<8x32xf32>
    %cst_8 = arith.constant dense<0.000000e+00> : vector<8xf32>
    %17 = vector.multi_reduction <add>, %16, %cst_8 [1] : vector<8x32xf32> to vector<8xf32>
    %18 = vector.shape_cast %17 : vector<8xf32> to vector<8x1xf32>
    %19 = arith.addf %13, %18 : vector<8x1xf32>
    %c0_9 = arith.constant 0 : index
    %c0_10 = arith.constant 0 : index
    %20 = vector.load %arg6[%c0_9, %c0_10] : memref<8x1xf32, #tpu.memory_space<vmem>>, vector<8x1xf32>
    tpu.vector_store %arg6[%c0_9, %c0_10], %19 {strides = array<i32>} : memref<8x1xf32, #tpu.memory_space<vmem>>, vector<8x1xf32>,
    %c0_11 = arith.constant 0 : index
    %c0_12 = arith.constant 0 : index
    %21 = vector.load %arg5[%c0_11, %c0_12] : memref<8x1xf32, #tpu.memory_space<vmem>>, vector<8x1xf32>
    tpu.vector_store %arg5[%c0_11, %c0_12], %9 {strides = array<i32>} : memref<8x1xf32, #tpu.memory_space<vmem>>, vector<8x1xf32>,
    %c32_i32 = arith.constant 32 : i32
    %22 = arith.muli %arg1, %c32_i32 : i32
    %23 = vector.broadcast %22 : i32 to vector<8x1xi32>
    %24 = arith.subi %4, %23 : vector<8x1xi32>
    %25 = vector.broadcast %24 : vector<8x1xi32> to vector<8x32xi32>
    %26 = arith.cmpi eq, %5, %25 : vector<8x32xi32>
    %c0_13 = arith.constant 0 : index
    %c0_14 = arith.constant 0 : index
    %27 = vector.load %arg8[%c0_13, %c0_14] : memref<8x1xf32, #tpu.memory_space<vmem>>, vector<8x1xf32>
    %cst_15 = arith.constant 0.000000e+00 : f32
    %28 = vector.broadcast %cst_15 : f32 to vector<8x32xf32>
    %29 = arith.select %26, %3, %28 : vector<8x32xi1>, vector<8x32xf32>
    %cst_16 = arith.constant dense<0.000000e+00> : vector<8xf32>
    %30 = vector.multi_reduction <add>, %29, %cst_16 [1] : vector<8x32xf32> to vector<8xf32>
    %31 = vector.shape_cast %30 : vector<8xf32> to vector<8x1xf32>
    %32 = arith.addf %27, %31 : vector<8x1xf32>
    %c0_17 = arith.constant 0 : index
    %c0_18 = arith.constant 0 : index
    %33 = vector.load %arg8[%c0_17, %c0_18] : memref<8x1xf32, #tpu.memory_space<vmem>>, vector<8x1xf32>
    tpu.vector_store %arg8[%c0_17, %c0_18], %32 {strides = array<i32>} : memref<8x1xf32, #tpu.memory_space<vmem>>, vector<8x1xf32>,
    %c0_19 = arith.constant 0 : index
    %c0_20 = arith.constant 0 : index
    %34 = vector.load %arg7[%c0_19, %c0_20] : memref<8x1xf32, #tpu.memory_space<vmem>>, vector<8x1xf32>
    %cst_21 = arith.constant dense<0.000000e+00> : vector<8xf32>
    %35 = vector.multi_reduction <add>, %3, %cst_21 [1] : vector<8x32xf32> to vector<8xf32>
    %36 = vector.shape_cast %35 : vector<8xf32> to vector<8x1xf32>
    %37 = arith.addf %34, %36 : vector<8x1xf32>
    %c0_22 = arith.constant 0 : index
    %c0_23 = arith.constant 0 : index
    %38 = vector.load %arg7[%c0_22, %c0_23] : memref<8x1xf32, #tpu.memory_space<vmem>>, vector<8x1xf32>
    tpu.vector_store %arg7[%c0_22, %c0_23], %37 {strides = array<i32>} : memref<8x1xf32, #tpu.memory_space<vmem>>, vector<8x1xf32>,
    %c0_i32_24 = arith.constant 0 : i32
    %39 = arith.cmpi eq, %arg1, %c0_i32_24 : i32
    %40 = arith.extui %39 : i1 to i32
    %c0_i32_25 = arith.constant 0 : i32
    %41 = arith.cmpi ne, %40, %c0_i32_25 : i32
    scf.if %41 {
      %c0_26 = arith.constant 0 : index
      %c0_27 = arith.constant 0 : index
      %42 = vector.load %arg5[%c0_26, %c0_27] : memref<8x1xf32, #tpu.memory_space<vmem>>, vector<8x1xf32>
      %c0_28 = arith.constant 0 : index
      %c0_29 = arith.constant 0 : index
      %43 = vector.load %arg6[%c0_28, %c0_29] : memref<8x1xf32, #tpu.memory_space<vmem>>, vector<8x1xf32>
      %44 = math.log %43 : vector<8x1xf32>
      %45 = arith.addf %42, %44 : vector<8x1xf32>
      %c0_30 = arith.constant 0 : index
      %c0_31 = arith.constant 0 : index
      %46 = vector.load %arg8[%c0_30, %c0_31] : memref<8x1xf32, #tpu.memory_space<vmem>>, vector<8x1xf32>
      %cst_32 = arith.constant 0.899999976 : f32
      %47 = vector.broadcast %cst_32 : f32 to vector<8x1xf32>
      %48 = arith.mulf %47, %46 : vector<8x1xf32>
      %c0_33 = arith.constant 0 : index
      %c0_34 = arith.constant 0 : index
      %49 = vector.load %arg7[%c0_33, %c0_34] : memref<8x1xf32, #tpu.memory_space<vmem>>, vector<8x1xf32>
      %cst_35 = arith.constant 3.125000e-03 : f32
      %50 = vector.broadcast %cst_35 : f32 to vector<8x1xf32>
      %51 = arith.mulf %50, %49 : vector<8x1xf32>
      %52 = arith.addf %48, %51 : vector<8x1xf32>
      %53 = arith.subf %45, %52 : vector<8x1xf32>
      %c8_i32 = arith.constant 8 : i32
      %54 = arith.muli %arg0, %c8_i32 : i32
      %55 = tpu.iota {dimensions = array<i32: 0>} : vector<8x1xi32>
      %56 = vector.broadcast %54 : i32 to vector<8x1xi32>
      %57 = arith.addi %56, %55 : vector<8x1xi32>
      %c8_i32_36 = arith.constant 8 : i32
      %58 = vector.broadcast %c8_i32_36 : i32 to vector<8x1xi32>
      %59 = arith.cmpi slt, %57, %58 : vector<8x1xi32>
      %cst_37 = arith.constant 0.000000e+00 : f32
      %60 = vector.broadcast %cst_37 : f32 to vector<8x1xf32>
      %61 = arith.select %59, %53, %60 : vector<8x1xi1>, vector<8x1xf32>
      %c0_38 = arith.constant 0 : index
      %c0_39 = arith.constant 0 : index
      %62 = vector.load %arg4[%c0_38, %c0_39] : memref<8x1xf32, #tpu.memory_space<vmem>>, vector<8x1xf32>
      tpu.vector_store %arg4[%c0_38, %c0_39], %61 {strides = array<i32>} : memref<8x1xf32, #tpu.memory_space<vmem>>, vector<8x1xf32>,
    } else {
    }
    return
  }
  func.func @transform_0(%arg0: i32, %arg1: i32) -> (i32, i32) {
    %c0_i32 = arith.constant 0 : i32
    return %arg0, %arg1 : i32, i32
  }
  func.func @transform_1(%arg0: i32, %arg1: i32) -> (i32, i32) {
    %c0_i32 = arith.constant 0 : i32
    %c0_i32_0 = arith.constant 0 : i32
    return %arg0, %c0_i32 : i32, i32
  }
  func.func @transform_2(%arg0: i32, %arg1: i32) -> (i32, i32) {
    %c0_i32 = arith.constant 0 : i32
    %c0_i32_0 = arith.constant 0 : i32
    return %arg0, %c0_i32 : i32, i32
  }
}

</mosaic_0001>

<llo_original>
// kernel: tpu_custom_call.1
$region0: #{tpu_custom_call.1}
  #allocation0 [shape = 'u32[]', space=smem, size = 0x4, offset = 0x4, fixed_abs, tag = 'smem constant byte address 0x4 - core index']
  #allocation1 [shape = 'u32[144,128]{1,0:T(1,128)}', space=vmem, size = 0x12000, scoped, tag = 'internal scratch']
  #allocation2 [shape = 'f32[8,1]{1,0:T(8,128)}', space=vmem, size = 0x1000, scoped, tag = 'scratch operand']
  #allocation3 [shape = 'f32[8,1]{1,0:T(8,128)}', space=vmem, size = 0x1000, scoped, tag = 'scratch operand']
  #allocation4 [shape = 'f32[8,1]{1,0:T(8,128)}', space=vmem, size = 0x1000, scoped, tag = 'scratch operand']
  #allocation5 [shape = 'f32[8,1]{1,0:T(8,128)}', space=vmem, size = 0x1000, scoped, tag = 'scratch operand']
  %s0 = inlined_call_operand.vmem [shape: f32[8,32], index: 0, kind: input, shape index: {}]
  %s1 = inlined_call_operand.vmem [shape: s32[8,1], index: 1, kind: input, shape index: {}]
  %s2 = inlined_call_operand.vmem [shape: f32[8,1], index: 2, kind: output, shape index: {}]
  %s3 = sld [smem:[#allocation0]]
  $region26: #{tpu_custom_call.1} parent=0
    _
  %s5 = ssub.s32 1, %s3
  %s6 = scalar_select 0, %s5, %s3
  // Predicated region
  $region2: #{tpu_custom_call.1} parent=0 // pred_check
    _
  $region3: #{tpu_custom_call.1} parent=0 // pred_check_branch
    %8 = sbr.rel (0) target = $region5
  $region4: #{tpu_custom_call.1} parent=0 // pred_region
    _
  $region5: #{tpu_custom_call.1} parent=0 // pred_fallthru
    _
  // Predicated region
  $region6: #{tpu_custom_call.1} parent=0 // pred_check
    _
  $region7: #{tpu_custom_call.1} parent=0 // pred_check_branch
    %10 = sbr.rel (0) target = $region9
  $region8: #{tpu_custom_call.1} parent=0 // pred_region
    _
  $region9: #{tpu_custom_call.1} parent=0 // pred_fallthru
    _
  %p11 = scmp.eq.s32.totalorder 0, 0
  // Predicated region
  $region10: #{tpu_custom_call.1} parent=0 // pred_check
    %p12 = pneg %p11
  $region11: #{tpu_custom_call.1} parent=0 // pred_check_branch
    %14 = sbr.rel (%p12) target = $region13
  $region12: #{tpu_custom_call.1} parent=0 // pred_region
    %vm15 = vcmask 7168
    %16 = vst.msk [vmem:[#allocation2] sm:$0xff] %vm15, -inf
    %17 = vst.msk [vmem:[#allocation3] sm:$0xff] %vm15, 0.0
    %18 = vst.msk [vmem:[#allocation4] sm:$0xff] %vm15, 0.0
    %19 = vst.msk [vmem:[#allocation5] sm:$0xff] %vm15, 0.0
  $region13: #{tpu_custom_call.1} parent=0 // pred_fallthru
    _
  %v20 = vld [vmem:[%s0] sm:$0xff]
  %v21 = vld [vmem:[%s1] sm:$0xff]
  %v22 = vlaneseq
  %v23 = vand.u32 %v22, 127
  %vm24 = vcmask 261120
  %v25 = vsel %vm24, %v20, -inf
  %26 = vmax.xlane.f32.xlu0 %v25
  %v27 = vpop.xlane.xlu0 %26
  %v28 = vld [vmem:[#allocation2] sm:$0xff]
  %v29 = vmax.f32 %v28, %v27
  %v30 = vsub.f32 %v28, %v29
  %v31 = vmul.f32 %v30, 1.442695
  %v32 = vpow.pop %v31
  %v33 = vld [vmem:[#allocation3] sm:$0xff]
  %v34 = vmul.f32 %v33, %v32
  %36 = vset.pattern.permute.xlu0 0
  %37 = vperm.xlu0 %36, %v29
  %v38 = vpop.permute.xlu0 %37
  %v40 = vsub.f32 %v20, %v38
  %v41 = vmul.f32 %v40, 1.442695
  %v42 = vpow.pop %v41
  %v43 = vsel %vm24, %v42, 0.0
  %44 = vadd.xlane.f32.xlu0 %v43
  %v45 = vpop.xlane.xlu0 %44
  %v46 = vadd.f32 %v34, %v45
  %vm47 = vcmask 7168
  %48 = vst.msk [vmem:[#allocation3] sm:$0xff] %vm47, %v46
  %49 = vst.msk [vmem:[#allocation2] sm:$0xff] %vm47, %v29
  %s50 = smul.u32 0, 32
  %v51 = vstv %s50
  %v52 = vsub.s32 %v21, %v51
  %53 = vset.pattern.permute.xlu0 0
  %54 = vperm.xlu0 %53, %v52
  %v55 = vpop.permute.xlu0 %54
  %vm56 = vcmp.eq.s32.totalorder %v23, %v55
  %v57 = vld [vmem:[#allocation5] sm:$0xff]
  %v58 = vsel %vm56, %v20, 0.0
  %v59 = vsel %vm24, %v58, 0.0
  %60 = vadd.xlane.f32.xlu0 %v59
  %v61 = vpop.xlane.xlu0 %60
  %v62 = vadd.f32 %v57, %v61
  %63 = vst.msk [vmem:[#allocation5] sm:$0xff] %vm47, %v62
  %v64 = vld [vmem:[#allocation4] sm:$0xff]
  %v65 = vsel %vm24, %v20, 0.0
  %66 = vadd.xlane.f32.xlu0 %v65
  %v67 = vpop.xlane.xlu0 %66
  %v68 = vadd.f32 %v64, %v67
  %69 = vst.msk [vmem:[#allocation4] sm:$0xff] %vm47, %v68
  // Predicated region
  $region14: #{tpu_custom_call.1} parent=0 // pred_check
    %p70 = pneg %p11
  $region15: #{tpu_custom_call.1} parent=0 // pred_check_branch
    %72 = sbr.rel (%p70) target = $region17
  $region16: #{tpu_custom_call.1} parent=0 // pred_region
    %v73 = vld [vmem:[#allocation2] sm:$0xff]
    %v74 = vld [vmem:[#allocation3] sm:$0xff]
    %v75 = vlog2.pop %v74
    %v76 = vmul.f32 %v75, 0.6931472
    %v77 = vadd.f32 %v73, %v76
    %v78 = vld [vmem:[#allocation5] sm:$0xff]
    %v79 = vmul.f32 %v78, 0.9
    %v80 = vld [vmem:[#allocation4] sm:$0xff]
    %v81 = vmul.f32 %v80, 0.003125
    %v82 = vadd.f32 %v79, %v81
    %v83 = vsub.f32 %v77, %v82
    %s84 = smul.u32 0, 8
    %v85 = vlaneseq
    %v86 = vshrl.u32 %v85, 7
    %v87 = vstv %s84
    %v88 = vadd.s32 %v87, %v86
    %vm89 = vcmp.lt.s32.totalorder %v88, 8
    %v90 = vsel %vm89, %v83, 0.0
    %91 = vst.msk [vmem:[%s2] sm:$0xff] %vm47, %v90
  $region17: #{tpu_custom_call.1} parent=0 // pred_fallthru
    _
  // Predicated region
  $region18: #{tpu_custom_call.1} parent=0 // pred_check
    _
  $region19: #{tpu_custom_call.1} parent=0 // pred_check_branch
    %93 = sbr.rel (0) target = $region21
  $region20: #{tpu_custom_call.1} parent=0 // pred_region
    _
  $region21: #{tpu_custom_call.1} parent=0 // pred_fallthru
    _
  // Predicated region
  $region22: #{tpu_custom_call.1} parent=0 // pred_check
    _
  $region23: #{tpu_custom_call.1} parent=0 // pred_check_branch
    %95 = sbr.rel (0) target = $region25
  $region24: #{tpu_custom_call.1} parent=0 // pred_region
    _
  $region25: #{tpu_custom_call.1} parent=0 // pred_fallthru
    _

</llo_original>
